<compile_context>
chip_gen: v5e
topology: v5e:2x2
jax: 0.10.0
libtpu: 0.0.40
codegen_flags: <defaults>
</compile_context>

<pallas_src>
import functools

import jax
import jax.numpy as jnp
from jax import lax
from jax.experimental import pallas as pl
from jax.experimental.pallas import tpu as pltpu


def _dice_kernel(x_ref, t_ref, w_ref, out_ref, acc_i, acc_y, acc_z,
                 *, apply_softmax, n_classes, n_valid_last):
    b = pl.program_id(0)
    jn = pl.program_id(1)
    C, TN = x_ref.shape

    @pl.when(jnp.logical_and(b == 0, jn == 0))
    def _():
        acc_i[...] = jnp.zeros_like(acc_i)
        acc_y[...] = jnp.zeros_like(acc_y)
        acc_z[...] = jnp.zeros_like(acc_z)

    x = x_ref[...].astype(jnp.float32)              # (C, TN)

    if apply_softmax:
        m = jnp.max(x, axis=0, keepdims=True)       # softmax over class axis
        e = jnp.exp(x - m)
        s = e * pl.reciprocal(jnp.sum(e, axis=0, keepdims=True), approx=True)
    else:
        s = x

    # One-hot target built in-kernel.  Padded columns hold class index C
    # (out of range), so they contribute nothing to intersect / y_sum.
    t = t_ref[...]                                  # (1, TN) int32
    cls_iota = lax.broadcasted_iota(jnp.int32, (C, TN), 0)
    onehot = (cls_iota == t).astype(jnp.float32)    # (C, TN)

    # Mask softmax scores on padded columns (needed only for z_sum).  Static
    # no-op when H*W divides the tile; otherwise a cheap (1, TN) mask that
    # only bites on the last pixel tile of each batch element.
    if n_valid_last < TN:
        last = jn == pl.num_programs(1) - 1
        col = lax.broadcasted_iota(jnp.int32, (1, TN), 1)
        limit = jnp.where(last, n_valid_last, TN)
        s = s * (col < limit).astype(jnp.float32)

    acc_i[...] += jnp.sum(s * onehot, axis=1, keepdims=True)   # intersect (C,1)
    acc_y[...] += jnp.sum(onehot, axis=1, keepdims=True)       # sum(t^2)==sum(t)
    acc_z[...] += jnp.sum(s * s, axis=1, keepdims=True)        # sum(s^2)

    @pl.when(jnp.logical_and(b == pl.num_programs(0) - 1,
                             jn == pl.num_programs(1) - 1))
    def _():
        smooth = 1e-05
        dice = (2.0 * acc_i[...] + smooth) / (acc_z[...] + acc_y[...] + smooth)
        per_class = (1.0 - dice) * w_ref[...]                  # (C, 1)
        out_ref[...] = jnp.sum(per_class, keepdims=True) / float(n_classes)


def dice_loss(logits, target, weights=None, softmax=True, tile_n=8192):
    """Pallas implementation of DiceLoss.forward.

    logits: (B, C, H, W) float, target: (B, H, W) integer class indices.
    Returns a scalar float32 loss.
    """
    B, C, H, W = logits.shape
    HW = H * W

    # Lane tile: large (amortizes per-grid-step overhead) but clamped to the
    # 128-padded pixel count so small inputs use a single tile.
    hw_128 = ((HW + 127) // 128) * 128
    tile = min(int(tile_n), hw_128)
    tile = ((tile + 127) // 128) * 128
    n_tiles = pl.cdiv(HW, tile)
    hw_pad = n_tiles * tile

    # Free reshape of NCHW — no HBM transpose, no dtype upcast in the wrapper.
    x = logits.reshape(B, C, HW)
    t = target.reshape(B, 1, HW).astype(jnp.int32)
    if hw_pad != HW:
        x = jnp.pad(x, ((0, 0), (0, 0), (0, hw_pad - HW)))
        # Pad target with out-of-range class C so its one-hot is zero there.
        t = jnp.pad(t, ((0, 0), (0, 0), (0, hw_pad - HW)), constant_values=C)

    if weights is None:
        weights = [1.0] * C
    w = jnp.asarray(weights, dtype=jnp.float32).reshape(C, 1)

    n_valid_last = HW - (n_tiles - 1) * tile   # valid columns in the last tile

    kernel = functools.partial(_dice_kernel, apply_softmax=softmax,
                               n_classes=C, n_valid_last=n_valid_last)

    out = pl.pallas_call(
        kernel,
        out_shape=jax.ShapeDtypeStruct((1, 1), jnp.float32),
        grid_spec=pltpu.PrefetchScalarGridSpec(
            num_scalar_prefetch=0,
            grid=(B, n_tiles),
            in_specs=[
                pl.BlockSpec((None, C, tile),
                             lambda b, j: (b, 0, j)),       # logits tile
                pl.BlockSpec((None, 1, tile),
                             lambda b, j: (b, 0, j)),       # target tile
                pl.BlockSpec((C, 1), lambda b, j: (0, 0)),  # class weights
            ],
            out_specs=pl.BlockSpec((1, 1), lambda b, j: (0, 0)),
            scratch_shapes=[
                pltpu.VMEM((C, 1), jnp.float32),   # intersect accumulator
                pltpu.VMEM((C, 1), jnp.float32),   # y_sum accumulator
                pltpu.VMEM((C, 1), jnp.float32),   # z_sum accumulator
            ],
        ),
        compiler_params=pltpu.CompilerParams(
            dimension_semantics=("arbitrary", "arbitrary")),
    )(x, t, w)
    return out[0, 0]


def dice_loss_ref(logits, target, weights=None, softmax=True):
    """Pure-JAX reference matching the PyTorch module semantics."""
    B, C, H, W = logits.shape
    if weights is None:
        weights = [1.0] * C
    probs = jax.nn.softmax(logits.astype(jnp.float32), axis=1) if softmax \
        else logits.astype(jnp.float32)
    onehot = jax.nn.one_hot(target, C, axis=1, dtype=jnp.float32)
    smooth = 1e-05
    loss = 0.0
    for i in range(C):
        s = probs[:, i]
        t = onehot[:, i]
        intersect = jnp.sum(s * t)
        y_sum = jnp.sum(t * t)
        z_sum = jnp.sum(s * s)
        dice = (2 * intersect + smooth) / (z_sum + y_sum + smooth)
        loss = loss + (1 - dice) * weights[i]
    return loss / C


if __name__ == "__main__":
    key = jax.random.PRNGKey(0)
    k_logits, k_target = jax.random.split(key)

    B, C, H, W = 2, 4, 16, 16
    logits = jax.random.normal(k_logits, (B, C, H, W), dtype=jnp.float32)
    target = jax.random.randint(k_target, (B, H, W), 0, C, dtype=jnp.int32)
    class_weights = [1.0, 1.0, 1.0, 1.0]

    loss = dice_loss(logits, target, weights=class_weights, softmax=True)
    loss = jax.block_until_ready(loss)

    ref = dice_loss_ref(logits, target, weights=class_weights, softmax=True)
    # Tolerance loosened to cover the EUP approximate-reciprocal softmax
    # denominator (~1e-3 relative).
    assert jnp.allclose(loss, ref, rtol=2e-3, atol=2e-3), (loss, ref)

    print("KERNEL_OK")
</pallas_src>

<mosaic_0001>
module attributes {stable_mosaic.version = 11 : i64} {
  func.func @_dice_kernel(%arg0: i32, %arg1: i32, %arg2: memref<1x4x256xf32, #tpu.memory_space<vmem>>, %arg3: memref<1x1x256xi32, #tpu.memory_space<vmem>>, %arg4: memref<4x1xf32, #tpu.memory_space<vmem>>, %arg5: memref<1x1xf32, #tpu.memory_space<vmem>>, %arg6: memref<4x1xf32, #tpu.memory_space<vmem>>, %arg7: memref<4x1xf32, #tpu.memory_space<vmem>>, %arg8: memref<4x1xf32, #tpu.memory_space<vmem>>) attributes {dimension_semantics = [#tpu.dimension_semantics<arbitrary>, #tpu.dimension_semantics<arbitrary>], iteration_bounds = array<i64: 2, 1>, scalar_prefetch = 0 : i64, scratch_operands = 3 : i64, tpu.core_type = #tpu.core_type<tc>, window_params = [{transform_indices = @transform_0, window_bounds = array<i64: 1, 4, 256>}, {transform_indices = @transform_1, window_bounds = array<i64: 1, 1, 256>}, {pipeline_mode = #tpu.pipeline_mode<synchronous>, transform_indices = @transform_2, window_bounds = array<i64: 4, 1>}, {pipeline_mode = #tpu.pipeline_mode<synchronous>, transform_indices = @transform_3, window_bounds = array<i64: 1, 1>}]} {
    %c0_i32 = arith.constant 0 : i32
    %0 = arith.cmpi eq, %arg0, %c0_i32 : i32
    %c0_i32_0 = arith.constant 0 : i32
    %1 = arith.cmpi eq, %arg1, %c0_i32_0 : i32
    %2 = arith.andi %0, %1 : i1
    %3 = arith.extui %2 : i1 to i32
    %c0_i32_1 = arith.constant 0 : i32
    %4 = arith.cmpi ne, %3, %c0_i32_1 : i32
    scf.if %4 {
      %cst_25 = arith.constant 0.000000e+00 : f32
      %46 = vector.broadcast %cst_25 : f32 to vector<4x1xf32>
      %c0_26 = arith.constant 0 : index
      %c0_27 = arith.constant 0 : index
      %47 = vector.load %arg6[%c0_26, %c0_27] : memref<4x1xf32, #tpu.memory_space<vmem>>, vector<4x1xf32>
      tpu.vector_store %arg6[%c0_26, %c0_27], %46 {strides = array<i32>} : memref<4x1xf32, #tpu.memory_space<vmem>>, vector<4x1xf32>,
      %cst_28 = arith.constant 0.000000e+00 : f32
      %48 = vector.broadcast %cst_28 : f32 to vector<4x1xf32>
      %c0_29 = arith.constant 0 : index
      %c0_30 = arith.constant 0 : index
      %49 = vector.load %arg7[%c0_29, %c0_30] : memref<4x1xf32, #tpu.memory_space<vmem>>, vector<4x1xf32>
      tpu.vector_store %arg7[%c0_29, %c0_30], %48 {strides = array<i32>} : memref<4x1xf32, #tpu.memory_space<vmem>>, vector<4x1xf32>,
      %cst_31 = arith.constant 0.000000e+00 : f32
      %50 = vector.broadcast %cst_31 : f32 to vector<4x1xf32>
      %c0_32 = arith.constant 0 : index
      %c0_33 = arith.constant 0 : index
      %51 = vector.load %arg8[%c0_32, %c0_33] : memref<4x1xf32, #tpu.memory_space<vmem>>, vector<4x1xf32>
      tpu.vector_store %arg8[%c0_32, %c0_33], %50 {strides = array<i32>} : memref<4x1xf32, #tpu.memory_space<vmem>>, vector<4x1xf32>,
    } else {
    }
    %c0 = arith.constant 0 : index
    %c0_2 = arith.constant 0 : index
    %c0_3 = arith.constant 0 : index
    %5 = vector.load %arg2[%c0, %c0_2, %c0_3] : memref<1x4x256xf32, #tpu.memory_space<vmem>>, vector<1x4x256xf32>
    %6 = vector.shape_cast %5 : vector<1x4x256xf32> to vector<4x256xf32>
    %cst = arith.constant dense<0xFF800000> : vector<256xf32>
    %7 = vector.multi_reduction <maximumf>, %6, %cst [0] : vector<4x256xf32> to vector<256xf32>
    %8 = vector.shape_cast %7 : vector<256xf32> to vector<1x256xf32>
    %9 = vector.broadcast %8 : vector<1x256xf32> to vector<4x256xf32>
    %10 = arith.subf %6, %9 : vector<4x256xf32>
    %11 = math.exp %10 : vector<4x256xf32>
    %cst_4 = arith.constant dense<0.000000e+00> : vector<256xf32>
    %12 = vector.multi_reduction <add>, %11, %cst_4 [0] : vector<4x256xf32> to vector<256xf32>
    %13 = vector.shape_cast %12 : vector<256xf32> to vector<1x256xf32>
    %14 = tpu.reciprocal %13 {approx = true} : vector<1x256xf32> -> vector<1x256xf32>
    %15 = vector.broadcast %14 : vector<1x256xf32> to vector<4x256xf32>
    %16 = arith.mulf %11, %15 : vector<4x256xf32>
    %c0_5 = arith.constant 0 : index
    %c0_6 = arith.constant 0 : index
    %c0_7 = arith.constant 0 : index
    %17 = vector.load %arg3[%c0_5, %c0_6, %c0_7] : memref<1x1x256xi32, #tpu.memory_space<vmem>>, vector<1x1x256xi32>
    %18 = vector.shape_cast %17 : vector<1x1x256xi32> to vector<1x256xi32>
    %19 = tpu.iota {dimensions = array<i32: 0>} : vector<4x256xi32>
    %20 = vector.broadcast %18 : vector<1x256xi32> to vector<4x256xi32>
    %21 = arith.cmpi eq, %19, %20 : vector<4x256xi32>
    %22 = arith.extui %21 : vector<4x256xi1> to vector<4x256xi32>
    %23 = arith.sitofp %22 : vector<4x256xi32> to vector<4x256xf32>
    %c0_8 = arith.constant 0 : index
    %c0_9 = arith.constant 0 : index
    %24 = vector.load %arg6[%c0_8, %c0_9] : memref<4x1xf32, #tpu.memory_space<vmem>>, vector<4x1xf32>
    %25 = arith.mulf %16, %23 : vector<4x256xf32>
    %cst_10 = arith.constant dense<0.000000e+00> : vector<4xf32>
    %26 = vector.multi_reduction <add>, %25, %cst_10 [1] : vector<4x256xf32> to vector<4xf32>
    %27 = vector.shape_cast %26 : vector<4xf32> to vector<4x1xf32>
    %28 = arith.addf %24, %27 : vector<4x1xf32>
    %c0_11 = arith.constant 0 : index
    %c0_12 = arith.constant 0 : index
    %29 = vector.load %arg6[%c0_11, %c0_12] : memref<4x1xf32, #tpu.memory_space<vmem>>, vector<4x1xf32>
    tpu.vector_store %arg6[%c0_11, %c0_12], %28 {strides = array<i32>} : memref<4x1xf32, #tpu.memory_space<vmem>>, vector<4x1xf32>,
    %c0_13 = arith.constant 0 : index
    %c0_14 = arith.constant 0 : index
    %30 = vector.load %arg7[%c0_13, %c0_14] : memref<4x1xf32, #tpu.memory_space<vmem>>, vector<4x1xf32>
    %cst_15 = arith.constant dense<0.000000e+00> : vector<4xf32>
    %31 = vector.multi_reduction <add>, %23, %cst_15 [1] : vector<4x256xf32> to vector<4xf32>
    %32 = vector.shape_cast %31 : vector<4xf32> to vector<4x1xf32>
    %33 = arith.addf %30, %32 : vector<4x1xf32>
    %c0_16 = arith.constant 0 : index
    %c0_17 = arith.constant 0 : index
    %34 = vector.load %arg7[%c0_16, %c0_17] : memref<4x1xf32, #tpu.memory_space<vmem>>, vector<4x1xf32>
    tpu.vector_store %arg7[%c0_16, %c0_17], %33 {strides = array<i32>} : memref<4x1xf32, #tpu.memory_space<vmem>>, vector<4x1xf32>,
    %c0_18 = arith.constant 0 : index
    %c0_19 = arith.constant 0 : index
    %35 = vector.load %arg8[%c0_18, %c0_19] : memref<4x1xf32, #tpu.memory_space<vmem>>, vector<4x1xf32>
    %36 = arith.mulf %16, %16 : vector<4x256xf32>
    %cst_20 = arith.constant dense<0.000000e+00> : vector<4xf32>
    %37 = vector.multi_reduction <add>, %36, %cst_20 [1] : vector<4x256xf32> to vector<4xf32>
    %38 = vector.shape_cast %37 : vector<4xf32> to vector<4x1xf32>
    %39 = arith.addf %35, %38 : vector<4x1xf32>
    %c0_21 = arith.constant 0 : index
    %c0_22 = arith.constant 0 : index
    %40 = vector.load %arg8[%c0_21, %c0_22] : memref<4x1xf32, #tpu.memory_space<vmem>>, vector<4x1xf32>
    tpu.vector_store %arg8[%c0_21, %c0_22], %39 {strides = array<i32>} : memref<4x1xf32, #tpu.memory_space<vmem>>, vector<4x1xf32>,
    %c1_i32 = arith.constant 1 : i32
    %41 = arith.cmpi eq, %arg0, %c1_i32 : i32
    %c0_i32_23 = arith.constant 0 : i32
    %42 = arith.cmpi eq, %arg1, %c0_i32_23 : i32
    %43 = arith.andi %41, %42 : i1
    %44 = arith.extui %43 : i1 to i32
    %c0_i32_24 = arith.constant 0 : i32
    %45 = arith.cmpi ne, %44, %c0_i32_24 : i32
    scf.if %45 {
      %c0_25 = arith.constant 0 : index
      %c0_26 = arith.constant 0 : index
      %46 = vector.load %arg6[%c0_25, %c0_26] : memref<4x1xf32, #tpu.memory_space<vmem>>, vector<4x1xf32>
      %cst_27 = arith.constant 2.000000e+00 : f32
      %47 = vector.broadcast %cst_27 : f32 to vector<4x1xf32>
      %48 = arith.mulf %47, %46 : vector<4x1xf32>
      %cst_28 = arith.constant 9.99999974E-6 : f32
      %49 = vector.broadcast %cst_28 : f32 to vector<4x1xf32>
      %50 = arith.addf %48, %49 : vector<4x1xf32>
      %c0_29 = arith.constant 0 : index
      %c0_30 = arith.constant 0 : index
      %51 = vector.load %arg8[%c0_29, %c0_30] : memref<4x1xf32, #tpu.memory_space<vmem>>, vector<4x1xf32>
      %c0_31 = arith.constant 0 : index
      %c0_32 = arith.constant 0 : index
      %52 = vector.load %arg7[%c0_31, %c0_32] : memref<4x1xf32, #tpu.memory_space<vmem>>, vector<4x1xf32>
      %53 = arith.addf %51, %52 : vector<4x1xf32>
      %cst_33 = arith.constant 9.99999974E-6 : f32
      %54 = vector.broadcast %cst_33 : f32 to vector<4x1xf32>
      %55 = arith.addf %53, %54 : vector<4x1xf32>
      %56 = arith.divf %50, %55 : vector<4x1xf32>
      %cst_34 = arith.constant 1.000000e+00 : f32
      %57 = vector.broadcast %cst_34 : f32 to vector<4x1xf32>
      %58 = arith.subf %57, %56 : vector<4x1xf32>
      %c0_35 = arith.constant 0 : index
      %c0_36 = arith.constant 0 : index
      %59 = vector.load %arg4[%c0_35, %c0_36] : memref<4x1xf32, #tpu.memory_space<vmem>>, vector<4x1xf32>
      %60 = arith.mulf %58, %59 : vector<4x1xf32>
      %61 = vector.shape_cast %60 : vector<4x1xf32> to vector<1x4x1xf32>
      %cst_37 = arith.constant dense<0.000000e+00> : vector<1xf32>
      %62 = vector.multi_reduction <add>, %61, %cst_37 [1, 2] : vector<1x4x1xf32> to vector<1xf32>
      %63 = vector.shape_cast %62 : vector<1xf32> to vector<1x1x1xf32>
      %64 = vector.extract %63[0, 0, 0] : f32 from vector<1x1x1xf32>
      %65 = vector.broadcast %64 : f32 to vector<1x1xf32>
      %cst_38 = arith.constant 4.000000e+00 : f32
      %66 = vector.broadcast %cst_38 : f32 to vector<1x1xf32>
      %67 = arith.divf %65, %66 : vector<1x1xf32>
      %c0_39 = arith.constant 0 : index
      %c0_40 = arith.constant 0 : index
      %68 = vector.load %arg5[%c0_39, %c0_40] : memref<1x1xf32, #tpu.memory_space<vmem>>, vector<1x1xf32>
      tpu.vector_store %arg5[%c0_39, %c0_40], %67 {strides = array<i32>} : memref<1x1xf32, #tpu.memory_space<vmem>>, vector<1x1xf32>,
    } else {
    }
    return
  }
  func.func @transform_0(%arg0: i32, %arg1: i32) -> (i32, i32, i32) {
    %c0_i32 = arith.constant 0 : i32
    %c0_i32_0 = arith.constant 0 : i32
    return %arg0, %c0_i32, %arg1 : i32, i32, i32
  }
  func.func @transform_1(%arg0: i32, %arg1: i32) -> (i32, i32, i32) {
    %c0_i32 = arith.constant 0 : i32
    %c0_i32_0 = arith.constant 0 : i32
    return %arg0, %c0_i32, %arg1 : i32, i32, i32
  }
  func.func @transform_2(%arg0: i32, %arg1: i32) -> (i32, i32) {
    %c0_i32 = arith.constant 0 : i32
    %c0_i32_0 = arith.constant 0 : i32
    %c0_i32_1 = arith.constant 0 : i32
    return %c0_i32, %c0_i32_0 : i32, i32
  }
  func.func @transform_3(%arg0: i32, %arg1: i32) -> (i32, i32) {
    %c0_i32 = arith.constant 0 : i32
    %c0_i32_0 = arith.constant 0 : i32
    %c0_i32_1 = arith.constant 0 : i32
    return %c0_i32, %c0_i32_0 : i32, i32
  }
}

</mosaic_0001>

<llo_original>
// kernel: tpu_custom_call.1
$region0: #{tpu_custom_call.1}
  #allocation0 [shape = 'u32[]', space=smem, size = 0x4, offset = 0x4, fixed_abs, tag = 'smem constant byte address 0x4 - core index']
  #allocation1 [shape = 'u32[72,128]{1,0:T(1,128)}', space=vmem, size = 0x9000, scoped, tag = 'internal scratch']
  #allocation2 [shape = 'f32[4,1]{1,0:T(4,128)}', space=vmem, size = 0x800, scoped, tag = 'scratch operand']
  #allocation3 [shape = 'f32[4,1]{1,0:T(4,128)}', space=vmem, size = 0x800, scoped, tag = 'scratch operand']
  #allocation4 [shape = 'f32[4,1]{1,0:T(4,128)}', space=vmem, size = 0x800, scoped, tag = 'scratch operand']
  %s0 = inlined_call_operand.hbm [shape: f32[2,4,256], index: 0, kind: input, shape index: {}]
  %s1 = inlined_call_operand.vmem [shape: s32[2,1,256], index: 1, kind: input, shape index: {}]
  %s2 = inlined_call_operand.vmem [shape: f32[4,1], index: 2, kind: input, shape index: {}]
  %s3 = inlined_call_operand.hbm [shape: f32[1,1], index: 3, kind: output, shape index: {}]
  %s4 = sld [smem:[#allocation0]]
  $region57: #{tpu_custom_call.1} parent=0
    _
  %s6 = ssub.s32 1, %s4
  %s7 = scalar_select 0, %s6, %s4
  $region1: #{tpu_custom_call.1} parent=0
    #allocation5 [shape = 'u8[8192]{0}', space=vmem, size = 0x2000, scoped, tag = 'input window, operand 0']
    #allocation6 [shape = 's32[2]{0}', space=sflag, size = 0x8, scoped, tag = 'scoped memory for tpu_custom_call.1']
    #allocation7 [shape = 's32[2]{0}', space=sflag, size = 0x8, scoped, tag = 'scoped memory for tpu_custom_call.1']
    #allocation8 [shape = 'u8[512]{0}', space=vmem, size = 0x400, scoped, tag = 'output window, operand 0, single buffered']
    %8 = vsyncpa [#allocation6], 0
    %s9 = scalar_lea.sflag [#allocation6], 1
    %10 = vsyncpa %s9, 0
    %11 = vsyncpa [#allocation7], 0
    loop: start=0, step=1, limit=4
    $region2: #{tpu_custom_call.1} parent=1 // loop_pre_header
      _
    $region3: #{tpu_custom_call.1} parent=1 // loop_header
      %s13 = sphi 0, %s17
      %p14 = scmp.ge.s32.totalorder %s13, 4
      %s20 = sphi 0, %s32
      %s21 = sphi 0, %s28
      %s22 = sphi 0, %s20
      %s23 = sphi 0, %s21
      %s24 = sphi 0, %s22
      %s25 = sphi 0, %s23
      %s37 = sphi 0, %s39
      %s40 = sphi 0, %s37
      %s41 = sphi 0, %s40
      %s57 = sphi 0, %s41
      %s65 = sphi 0, %s67
      %s68 = sphi 0, %s65
      %s69 = sphi 0, %s68
      %s85 = sphi 0, %s69
      %s89 = sphi 0, %s89
      %s91 = sphi 0, %s89
      %s92 = sphi 0, %s91
      %s106 = sphi 0, %s92
      %s110 = sphi 0, %s110
      %s112 = sphi 0, %s110
      %s113 = sphi 0, %s112
      %s127 = sphi 0, %s113
    $region4: #{tpu_custom_call.1} parent=1 // loop_header_branch
      %16 = sbr.rel (%p14) target = $region8
    $region5: #{tpu_custom_call.1} parent=1 // loop_body
      %s18 = ssub.s32 %s13, 1
      %s19 = ssub.s32 %s13, 2
      %s26 = sadd.s32 1, %s21
      %p27 = scmp.ge.s32.totalorder %s26, 1
      %s28 = scalar_select %p27, 0, %s26
      %s29 = sadd.s32 1, %s20
      %s30 = scalar_select %p27, %s29, %s20
      %p31 = scmp.ge.s32.totalorder %s30, 2
      %s32 = scalar_select %p31, 0, %s30
      %s33 = ssub.s32 %s20, %s32
      %s34 = ssub.s32 %s21, %s28
      %s35 = sor.u32 %s33, %s34
      %p36 = scmp.eq.s32.totalorder %s35, 0
      %s38 = sadd.s32 %s37, 1
      %s39 = scalar_select %p36, %s37, %s38
      %p42 = pneg %p36
      %p43 = scmp.eq.s32.totalorder %s13, 1
      %p44 = por %p42, %p43
      %p45 = scmp.ne.s32.totalorder %s37, %s40
      %p46 = scmp.eq.s32.totalorder %s13, 0
      %p47 = por %p45, %p46
      %p48 = scmp.ne.s32.totalorder %s37, %s40
      %p49 = scmp.eq.s32.totalorder %s18, 1
      %p50 = por %p48, %p49
      %p51 = scmp.ne.s32.totalorder %s40, %s41
      %p52 = scmp.eq.s32.totalorder %s18, 0
      %p53 = por %p51, %p52
      %p54 = scmp.ne.s32.totalorder %s40, %s41
      %p55 = scmp.eq.s32.totalorder %s19, 1
      %p56 = por %p54, %p55
      %p58 = scmp.ne.s32.totalorder %s41, %s57
      %p59 = scmp.eq.s32.totalorder %s19, 0
      %p60 = por %p58, %p59
      %s61 = ssub.s32 %s20, %s32
      %s62 = ssub.s32 %s21, %s28
      %s63 = sor.u32 %s61, %s62
      %p64 = scmp.eq.s32.totalorder %s63, 0
      %s66 = sadd.s32 %s65, 1
      %s67 = scalar_select %p64, %s65, %s66
      %p70 = pneg %p64
      %p71 = scmp.eq.s32.totalorder %s13, 1
      %p72 = por %p70, %p71
      %p73 = scmp.ne.s32.totalorder %s65, %s68
      %p74 = scmp.eq.s32.totalorder %s13, 0
      %p75 = por %p73, %p74
      %p76 = scmp.ne.s32.totalorder %s65, %s68
      %p77 = scmp.eq.s32.totalorder %s18, 1
      %p78 = por %p76, %p77
      %p79 = scmp.ne.s32.totalorder %s68, %s69
      %p80 = scmp.eq.s32.totalorder %s18, 0
      %p81 = por %p79, %p80
      %p82 = scmp.ne.s32.totalorder %s68, %s69
      %p83 = scmp.eq.s32.totalorder %s19, 1
      %p84 = por %p82, %p83
      %p86 = scmp.ne.s32.totalorder %s69, %s85
      %p87 = scmp.eq.s32.totalorder %s19, 0
      %p88 = por %p86, %p87
      %s90 = sadd.s32 %s89, 1
      %p93 = scmp.eq.s32.totalorder %s13, 1
      %p94 = scmp.ne.s32.totalorder %s89, %s91
      %p95 = scmp.eq.s32.totalorder %s13, 0
      %p96 = por %p94, %p95
      %p97 = scmp.ne.s32.totalorder %s89, %s91
      %p98 = scmp.eq.s32.totalorder %s18, 1
      %p99 = por %p97, %p98
      %p100 = scmp.ne.s32.totalorder %s91, %s92
      %p101 = scmp.eq.s32.totalorder %s18, 0
      %p102 = por %p100, %p101
      %p103 = scmp.ne.s32.totalorder %s91, %s92
      %p104 = scmp.eq.s32.totalorder %s19, 1
      %p105 = por %p103, %p104
      %p107 = scmp.ne.s32.totalorder %s92, %s106
      %p108 = scmp.eq.s32.totalorder %s19, 0
      %p109 = por %p107, %p108
      %s111 = sadd.s32 %s110, 1
      %p114 = scmp.eq.s32.totalorder %s13, 1
      %p115 = scmp.ne.s32.totalorder %s110, %s112
      %p116 = scmp.eq.s32.totalorder %s13, 0
      %p117 = por %p115, %p116
      %p118 = scmp.ne.s32.totalorder %s110, %s112
      %p119 = scmp.eq.s32.totalorder %s18, 1
      %p120 = por %p118, %p119
      %p121 = scmp.ne.s32.totalorder %s112, %s113
      %p122 = scmp.eq.s32.totalorder %s18, 0
      %p123 = por %p121, %p122
      %p124 = scmp.ne.s32.totalorder %s112, %s113
      %p125 = scmp.eq.s32.totalorder %s19, 1
      %p126 = por %p124, %p125
      %p128 = scmp.ne.s32.totalorder %s113, %s127
      %p129 = scmp.eq.s32.totalorder %s19, 0
      %p130 = por %p128, %p129
      %p131 = scmp.le.s32.totalorder 1, %s13
      %p132 = scmp.lt.s32.totalorder %s13, 3
      %p133 = pnand %p131, %p132
      %p134 = pneg %p133
      // Predicated region
      $region9: #{tpu_custom_call.1} parent=5 // pred_check
        _
      $region10: #{tpu_custom_call.1} parent=5 // pred_check_branch
        %136 = sbr.rel (%p133) target = $region12
      $region11: #{tpu_custom_call.1} parent=5 // pred_region
        %s137 = ssub.s32 %s13, 1
        // Predicated region
        $region13: #{tpu_custom_call.1} parent=11 // pred_check
          %p138 = pneg %p102
        $region14: #{tpu_custom_call.1} parent=11 // pred_check_branch
          %140 = sbr.rel (%p138) target = $region16
        $region15: #{tpu_custom_call.1} parent=11 // pred_region
          _
        $region16: #{tpu_custom_call.1} parent=11 // pred_fallthru
          _
      $region12: #{tpu_custom_call.1} parent=5 // pred_fallthru
        _
      %p141 = scmp.lt.s32.totalorder %s13, 2
      // Predicated region
      $region17: #{tpu_custom_call.1} parent=5 // pred_check
        %p142 = pneg %p141
      $region18: #{tpu_custom_call.1} parent=5 // pred_check_branch
        %144 = sbr.rel (%p142) target = $region20
      $region19: #{tpu_custom_call.1} parent=5 // pred_region
        // Predicated region
        $region21: #{tpu_custom_call.1} parent=19 // pred_check
          %p145 = pneg %p47
        $region22: #{tpu_custom_call.1} parent=19 // pred_check_branch
          %147 = sbr.rel (%p145) target = $region24
        $region23: #{tpu_custom_call.1} parent=19 // pred_region
          %s148 = sand.u32 %s37, 1
          %s149 = scalar_lea.sflag [#allocation6], %s148
          %s150 = sand.u32 %s37, 1
          %s151 = smul.addr %s150, 8
          %s152 = scalar_lea.vmem [#allocation5], %s151
          %s153 = smul.u32 2, %s21
          %155 = vsyncadd %s149, 0
          %s156 = smul.addr %s20, 2
          %s157 = sadd.s32 %s153, %s156
          %s158 = smul.addr %s157, 4
          %s159 = scalar_lea.hbm %s0, %s158
          %s161 = sshll.u32 %s159, 4
          %s162 = int_to_ptr.hbm [resolvable:$true] %s161
          %s163 = sshll.u32 %s152, 4
          %s164 = int_to_ptr.vmem [resolvable:$true] %s163
          %166 = dma.hbm_to_vmem [thread:$0]  %s162, 128, %s164, %s149
        $region24: #{tpu_custom_call.1} parent=19 // pred_fallthru
          _
        // Predicated region
        $region25: #{tpu_custom_call.1} parent=19 // pred_check
          %p167 = pneg %p75
        $region26: #{tpu_custom_call.1} parent=19 // pred_check_branch
          %169 = sbr.rel (%p167) target = $region28
        $region27: #{tpu_custom_call.1} parent=19 // pred_region
          %s170 = smul.u32 2, %s21
          %p171 = scmp.lt.s32.totalorder %s20, 1
          %s172 = scalar_select %p171, %s20, 1
          %p173 = scmp.lt.s32.totalorder %s170, 1
          %s174 = scalar_select %p173, %s170, 1
          %s175 = smul.addr %s172, 2
          %s176 = sadd.s32 %s174, %s175
          %s177 = scalar_lea.vmem %s1, %s176
          %s178 = smul.u32 2, %s21
        $region28: #{tpu_custom_call.1} parent=19 // pred_fallthru
          _
      $region20: #{tpu_custom_call.1} parent=5 // pred_fallthru
        _
      %p179 = scmp.le.s32.totalorder 1, %s13
      %p180 = scmp.lt.s32.totalorder %s13, 3
      %p181 = pnand %p179, %p180
      %p182 = pneg %p181
      // Predicated region
      $region29: #{tpu_custom_call.1} parent=5 // pred_check
        _
      $region30: #{tpu_custom_call.1} parent=5 // pred_check_branch
        %184 = sbr.rel (%p181) target = $region32
      $region31: #{tpu_custom_call.1} parent=5 // pred_region
        %s185 = ssub.s32 %s13, 1
        %s186 = sand.u32 %s40, 1
        %s187 = scalar_lea.sflag [#allocation6], %s186
        %s188 = sand.u32 %s40, 1
        %s189 = smul.addr %s188, 8
        %s190 = scalar_lea.vmem [#allocation5], %s189
        // Predicated region
        $region33: #{tpu_custom_call.1} parent=31 // pred_check
          %p191 = pneg %p53
        $region34: #{tpu_custom_call.1} parent=31 // pred_check_branch
          %193 = sbr.rel (%p191) target = $region36
        $region35: #{tpu_custom_call.1} parent=31 // pred_region
          %195 = dma.done %s187, 128
        $region36: #{tpu_custom_call.1} parent=31 // pred_fallthru
          _
        %s196 = sand.u32 %s40, 1
        %s197 = scalar_lea.sflag [#allocation6], %s196
        %s198 = sand.u32 %s40, 1
        %s199 = smul.addr %s198, 8
        %s200 = scalar_lea.vmem [#allocation5], %s199
        %p201 = pneg %p53
        %p202 = pneg %p50
        %s203 = smul.u32 2, %s23
        %p204 = scmp.lt.s32.totalorder %s22, 1
        %s205 = scalar_select %p204, %s22, 1
        %p206 = scmp.lt.s32.totalorder %s203, 1
        %s207 = scalar_select %p206, %s203, 1
        %s208 = smul.addr %s205, 2
        %s209 = sadd.s32 %s207, %s208
        %s210 = scalar_lea.vmem %s1, %s209
        %p211 = pneg %p81
        %p212 = pneg %p78
        %p213 = pneg %p102
        %p214 = pneg %p99
        %p215 = pneg %p123
        %p216 = pneg %p120
        %s217 = smul.u32 2, %s23
        %s218 = smul.u32 2, %s23
        %p219 = scmp.lt.s32.totalorder %s22, 1
        %s220 = scalar_select %p219, %s22, 1
        %p221 = scmp.lt.s32.totalorder %s218, 1
        %s222 = scalar_select %p221, %s218, 1
        %s223 = smul.addr %s220, 2
        %s224 = sadd.s32 %s222, %s223
        %s225 = scalar_lea.vmem %s1, %s224
        %s226 = smul.u32 2, %s23
        %p227 = scmp.eq.s32.totalorder %s22, 0
        %p228 = scmp.eq.s32.totalorder %s23, 0
        %p229 = pnand %p227, %p228
        %p230 = pneg %p229
        // Predicated region
        $region37: #{tpu_custom_call.1} parent=31 // pred_check
          _
        $region38: #{tpu_custom_call.1} parent=31 // pred_check_branch
          %232 = sbr.rel (%p229) target = $region40
        $region39: #{tpu_custom_call.1} parent=31 // pred_region
          %vm233 = vcmask 3072
          %234 = vst.msk [vmem:[#allocation2] sm:$0xf] %vm233, 0.0
          %235 = vst.msk [vmem:[#allocation3] sm:$0xf] %vm233, 0.0
          %236 = vst.msk [vmem:[#allocation4] sm:$0xf] %vm233, 0.0
        $region40: #{tpu_custom_call.1} parent=31 // pred_fallthru
          _
        %v237 = vld [vmem:[%s190] sm:$0xff]
        %239 = vst [vmem:[#allocation1] ss:$2 sm:$0xff] %v237
        %v240 = vld.sshfl [vmem:[#allocation1] sm:$0xff pattern:$0x75316420]
        %v241 = vld.sshfl [vmem:[#allocation1 + $0x8] sm:$0xff pattern:$0x75316420]
        %vm244 = vcmask 1043456
        %v245 = vsel %vm244, %v240, -inf
        %v246 = vrot.slane %v245, 4
        %v247 = vmax.f32 %v245, %v246
        %v248 = vrot.slane %v247, 2
        %v249 = vmax.f32 %v247, %v248
        %v250 = vrot.slane %v249, 1
        %v251 = vmax.f32 %v249, %v250
        %v252 = vsel %vm244, %v241, -inf
        %v253 = vrot.slane %v252, 4
        %v254 = vmax.f32 %v252, %v253
        %v255 = vrot.slane %v254, 2
        %v256 = vmax.f32 %v254, %v255
        %v257 = vrot.slane %v256, 1
        %v258 = vmax.f32 %v256, %v257
        %v261 = vrot.slane %v258, 4
        %v262 = vsel %vm244, %v251, %v261
        %v264 = vsub.f32 %v237, %v262
        %v265 = vmul.f32 %v264, 1.442695
        %v266 = vpow.pop %v265
        %268 = vst [vmem:[#allocation1] ss:$2 sm:$0xff] %v266
        %v269 = vld.sshfl [vmem:[#allocation1] sm:$0xff pattern:$0x75316420]
        %v270 = vld.sshfl [vmem:[#allocation1 + $0x8] sm:$0xff pattern:$0x75316420]
        %v273 = vsel %vm244, %v269, 0.0
        %v274 = vrot.slane %v273, 4
        %v275 = vadd.f32 %v273, %v274
        %v276 = vrot.slane %v275, 2
        %v277 = vadd.f32 %v275, %v276
        %v278 = vrot.slane %v277, 1
        %v279 = vadd.f32 %v277, %v278
        %v280 = vsel %vm244, %v270, 0.0
        %v281 = vrot.slane %v280, 4
        %v282 = vadd.f32 %v280, %v281
        %v283 = vrot.slane %v282, 2
        %v284 = vadd.f32 %v282, %v283
        %v285 = vrot.slane %v284, 1
        %v286 = vadd.f32 %v284, %v285
        %v287 = vrcp.pop %v279
        %v288 = vrcp.pop %v286
        %v291 = vrot.slane %v288, 4
        %v292 = vsel %vm244, %v287, %v291
        %v294 = vmul.f32 %v266, %v292
        %v295 = vld [vmem:[%s225] sm:$0x3]
        %v296 = vlaneseq
        %v297 = vshrl.u32 %v296, 7
        %v298 = vperm.slane %v295, 0
        %v299 = vperm.slane %v295, 1
        %vm300 = vcmp.eq.s32.totalorder %v297, %v298
        %vm301 = vcmp.eq.s32.totalorder %v297, %v299
        %v302 = vsel %vm300, 1, 0
        %v303 = vsel %vm301, 1, 0
        %v304 = vcvt.s32.f32 %v302
        %v305 = vcvt.s32.f32 %v303
        %v306 = vld [vmem:[#allocation2] sm:$0xf]
        %v309 = vrot.slane %v305, 4
        %v310 = vsel %vm244, %v304, %v309
        %v312 = vmul.f32 %v294, %v310
        %314 = vst [vmem:[#allocation1] ss:$2 sm:$0xff] %v312
        %v315 = vld.sshfl [vmem:[#allocation1] sm:$0xff pattern:$0x75316420]
        %v316 = vld.sshfl [vmem:[#allocation1 + $0x8] sm:$0xff pattern:$0x75316420]
        %v319 = vsel %vm244, %v315, 0.0
        %v320 = vsel %vm244, %v316, 0.0
        %v321 = vadd.f32 %v319, %v320
        %322 = vadd.xlane.f32.xlu0 %v321
        %v323 = vpop.xlane.xlu0 %322
        %v324 = vadd.f32 %v306, %v323
        %vm325 = vcmask 3072
        %326 = vst.msk [vmem:[#allocation2] sm:$0xf] %vm325, %v324
        %v327 = vld [vmem:[#allocation3] sm:$0xf]
        %v328 = vsel %vm244, %v304, 0.0
        %v329 = vsel %vm244, %v305, 0.0
        %v330 = vadd.f32 %v328, %v329
        %331 = vadd.xlane.f32.xlu0 %v330
        %v332 = vpop.xlane.xlu0 %331
        %v333 = vadd.f32 %v327, %v332
        %334 = vst.msk [vmem:[#allocation3] sm:$0xf] %vm325, %v333
        %v335 = vld [vmem:[#allocation4] sm:$0xf]
        %v336 = vmul.f32 %v294, %v294
        %338 = vst [vmem:[#allocation1] ss:$2 sm:$0xff] %v336
        %v339 = vld.sshfl [vmem:[#allocation1] sm:$0xff pattern:$0x75316420]
        %v340 = vld.sshfl [vmem:[#allocation1 + $0x8] sm:$0xff pattern:$0x75316420]
        %v343 = vsel %vm244, %v339, 0.0
        %v344 = vsel %vm244, %v340, 0.0
        %v345 = vadd.f32 %v343, %v344
        %346 = vadd.xlane.f32.xlu0 %v345
        %v347 = vpop.xlane.xlu0 %346
        %v348 = vadd.f32 %v335, %v347
        %349 = vst.msk [vmem:[#allocation4] sm:$0xf] %vm325, %v348
        %p350 = scmp.eq.s32.totalorder %s22, 1
        %p351 = pnand %p350, %p228
        %p352 = pneg %p351
        // Predicated region
        $region41: #{tpu_custom_call.1} parent=31 // pred_check
          _
        $region42: #{tpu_custom_call.1} parent=31 // pred_check_branch
          %354 = sbr.rel (%p351) target = $region44
        $region43: #{tpu_custom_call.1} parent=31 // pred_region
          %v355 = vld [vmem:[#allocation2] sm:$0xf]
          %v356 = vmul.f32 %v355, 2.0
          %v357 = vadd.f32 %v356, 1e-05
          %v358 = vld [vmem:[#allocation4] sm:$0xf]
          %v359 = vld [vmem:[#allocation3] sm:$0xf]
          %v360 = vadd.f32 %v358, %v359
          %v361 = vadd.f32 %v360, 1e-05
          %v362 = vrcp.pop %v361
          %v363 = vmul.f32 %v361, %v362
          %v364 = vsub.f32 1.0, %v363
          %v365 = vmul.f32 %v362, %v364
          %v366 = vadd.f32 %v362, %v365
          %vm367 = vweird.f32 %v361
          %vm368 = vweird.f32 %v362
          %vm369 = vmor %vm367, %vm368
          %v370 = vsel %vm369, %v362, %v366
          %v371 = vand.u32 2147483647, %v361
          %vm372 = vcmp.eq.f32.partialorder %v371, 8.507059e+37
          %v373 = vand.u32 %v361, 2147483648
          %v374 = vor.u32 1.1754944e-38, %v373
          %v375 = vsel %vm372, %v374, %v370
          %v376 = vmul.f32 %v357, %v375
          %v377 = vsub.f32 1.0, %v376
          %v378 = vld [vmem:[%s2] sm:$0xf]
          %v379 = vmul.f32 %v377, %v378
          %v380 = vsel %vm325, %v379, 0.0
          %381 = vadd.xlane.f32.xlu0 %v380
          %v382 = vpop.xlane.xlu0 %381
          %v383 = vrot.slane %v382, 4
          %v384 = vadd.f32 %v382, %v383
          %v385 = vrot.slane %v384, 2
          %v386 = vadd.f32 %v384, %v385
          %v387 = vrot.slane %v386, 1
          %v388 = vadd.f32 %v386, %v387
          %s389 = vtos %v388
          %v390 = vstv %s389
          %v391 = vrcp.pop 4.0
          %v392 = vmul.f32 4.0, %v391
          %v393 = vsub.f32 1.0, %v392
          %v394 = vmul.f32 %v391, %v393
          %v395 = vadd.f32 %v391, %v394
          %vm396 = vweird.f32 %v391
          %v397 = vsel %vm396, %v391, %v395
          %v398 = vmul.f32 %v390, %v397
          %vm399 = vcmask 0
          %400 = vst.msk [vmem:[#allocation8] sm:$0x1] %vm399, %v398
        $region44: #{tpu_custom_call.1} parent=31 // pred_fallthru
          _
        // Predicated region
        $region45: #{tpu_custom_call.1} parent=31 // pred_check
          %p401 = pneg %p120
        $region46: #{tpu_custom_call.1} parent=31 // pred_check_branch
          %403 = sbr.rel (%p401) target = $region48
        $region47: #{tpu_custom_call.1} parent=31 // pred_region
          %405 = vsyncadd [#allocation7], 0
          %s407 = sshll.u32 [#allocation8], 4
          %s408 = int_to_ptr.vmem [resolvable:$true] %s407
          %s409 = sshll.u32 %s3, 4
          %s410 = int_to_ptr.hbm [resolvable:$true] %s409
          %412 = dma.vmem_to_hbm [thread:$0]  %s408, 16, %s410, [#allocation7]
        $region48: #{tpu_custom_call.1} parent=31 // pred_fallthru
          _
        // Predicated region
        $region49: #{tpu_custom_call.1} parent=31 // pred_check
          %p413 = pneg %p120
        $region50: #{tpu_custom_call.1} parent=31 // pred_check_branch
          %415 = sbr.rel (%p413) target = $region52
        $region51: #{tpu_custom_call.1} parent=31 // pred_region
          %417 = dma.done [#allocation7], 16
        $region52: #{tpu_custom_call.1} parent=31 // pred_fallthru
          _
      $region32: #{tpu_custom_call.1} parent=5 // pred_fallthru
        _
      %p418 = scmp.le.s32.totalorder 2, %s13
      // Predicated region
      $region53: #{tpu_custom_call.1} parent=5 // pred_check
        %p419 = pneg %p418
      $region54: #{tpu_custom_call.1} parent=5 // pred_check_branch
        %421 = sbr.rel (%p419) target = $region56
      $region55: #{tpu_custom_call.1} parent=5 // pred_region
        %s422 = ssub.s32 %s13, 2
      $region56: #{tpu_custom_call.1} parent=5 // pred_fallthru
        _
    $region6: #{tpu_custom_call.1} parent=1 // loop_footer
      %s17 = sadd.s32 1, %s13
    $region7: #{tpu_custom_call.1} parent=1 // loop_footer_branch
      %12 = sbr.rel target = $region3
    $region8: #{tpu_custom_call.1} parent=1 // loop_exit
      _
    %423 = vsyncpa [#allocation6], 1
    %s424 = scalar_lea.sflag [#allocation6], 1
    %425 = vsyncpa %s424, 1
    %426 = vsyncpa [#allocation7], 1
    %s427 = scalar_lea.sflag [#allocation7], 1
    %428 = vsyncpa %s427, 1

</llo_original>
